<compile_context>
chip_gen: v5e
topology: v5e:2x2
jax: 0.10.0
libtpu: 0.0.40
codegen_flags: <defaults>
</compile_context>

<pallas_src>
import functools

import jax
import jax.numpy as jnp
from jax.experimental import pallas as pl
from jax.experimental.pallas import tpu as pltpu

_MIB = 1024 * 1024


def _round_up(n: int, m: int) -> int:
    return ((n + m - 1) // m) * m


def _cdiv(a: int, b: int) -> int:
    return -(-a // b)


@functools.lru_cache(maxsize=1)
def _tpu_generation() -> str:
    """Coarse TPU generation string, used only for tiling / VMEM policy."""
    try:
        kind = jax.devices()[0].device_kind.lower()
    except Exception:
        return "unknown"
    for gen in ("v7", "v6", "v5"):
        if gen in kind:
            return gen
    return "unknown"


def _policy(generation: str):
    """Returns (default batch tile, VMEM-limit cap in bytes) per generation."""
    if generation == "v7":           # 64 MiB/TC: leave headroom for compiler scratch.
        return 256, 56 * _MIB
    if generation in ("v6", "v5"):   # 128 MiB VMEM: bigger tiles amortize step overhead.
        return 512, 100 * _MIB
    return 256, 64 * _MIB


@functools.lru_cache(maxsize=1)
def _supports_single_buffered_weights() -> bool:
    """Explicit feature gate for pipeline_mode=pl.Buffered(1) on constant-index inputs.

    Probes a tiny throwaway kernel once instead of wrapping the real kernel in a blanket
    try/except (which would silently mask genuine compile errors).
    """
    if not hasattr(pl, "Buffered"):
        return False

    def _probe(w_ref, o_ref):
        o_ref[...] = w_ref[...] + 1.0

    try:
        w = jnp.zeros((8, 128), jnp.float32)
        out = pl.pallas_call(
            _probe,
            out_shape=jax.ShapeDtypeStruct((16, 128), jnp.float32),
            grid=(2,),
            in_specs=[pl.BlockSpec((8, 128), lambda i: (0, 0),
                                   pipeline_mode=pl.Buffered(1))],
            out_specs=pl.BlockSpec((8, 128), lambda i: (i, 0)),
        )(w)
        jax.block_until_ready(out)
        return True
    except Exception:
        return False


def _mlp_kernel(x_ref, w1_ref, b1_ref, w2_ref, b2_ref, w3_ref, b3_ref, o_ref):
    # Three MXU matmuls fused; f32 accumulation + f32 bias-add/ReLU (VPU-safe on v5e).
    h1 = jnp.dot(x_ref[...], w1_ref[...],
                 preferred_element_type=jnp.float32) + b1_ref[...]
    h1 = jnp.maximum(h1, 0.0)
    h2 = jnp.dot(h1.astype(w2_ref.dtype), w2_ref[...],
                 preferred_element_type=jnp.float32) + b2_ref[...]
    h2 = jnp.maximum(h2, 0.0)
    out = jnp.dot(h2.astype(w3_ref.dtype), w3_ref[...],
                  preferred_element_type=jnp.float32) + b3_ref[...]
    o_ref[...] = out.astype(o_ref.dtype)   # (bb, Cp): lane-dense, unmasked store


def prepare_mlp_params(w1, b1, w2, b2, w3, b3, *, mxu_dtype=jnp.bfloat16):
    """One-time weight prep (hoisted out of the per-call path).

    Weights are cast to the MXU feed dtype; only the output lane dim (num_classes) is
    zero-padded to a multiple of 128 so the kernel's output store is lane-dense.  Padding
    is exact: padded output columns receive bias 0 and are sliced off after the kernel.
    Biases stay f32 (added post-matmul, f32 accumulation).
    """
    num_classes = w3.shape[1]
    cp = _round_up(num_classes, 128)
    params = (
        w1.astype(mxu_dtype),
        b1.astype(jnp.float32).reshape(1, -1),
        w2.astype(mxu_dtype),
        b2.astype(jnp.float32).reshape(1, -1),
        jnp.pad(w3.astype(mxu_dtype), ((0, 0), (0, cp - num_classes))),
        jnp.pad(b3.astype(jnp.float32).reshape(1, -1), ((0, 0), (0, cp - num_classes))),
    )
    return params, num_classes


@functools.partial(
    jax.jit,
    static_argnames=("num_classes", "block_b", "out_dtype", "generation",
                     "single_buffer_weights"),
)
def _mlp_forward_impl(x, w1, b1, w2, b2, w3, b3, *, num_classes, block_b, out_dtype,
                      generation, single_buffer_weights):
    B, F = x.shape
    H1 = w1.shape[1]
    H2 = w2.shape[1]
    Cp = w3.shape[1]                      # already 128-padded by prepare_mlp_params
    mxu_dtype = w1.dtype

    default_bb, vmem_cap = _policy(generation)
    bb_cap = default_bb if block_b is None else block_b

    # Batch tile: no manufactured work.  Shrink to the (8-aligned) batch when B is small.
    bb = min(_round_up(bb_cap, 8), _round_up(B, 8))
    n_steps = _cdiv(B, bb)
    if generation == "v7" and B > bb and n_steps % 2 == 1:
        # v7x megacore: rebalance to an even number of tiles (both TensorCores get equal,
        # real work) by shrinking the tile rather than padding with zero rows.
        n_steps += 1
        bb = _round_up(_cdiv(B, n_steps), 8)
        n_steps = _cdiv(B, bb)
    Bp = n_steps * bb

    # Pad batch rows with zeros (sliced off below); cast to MXU dtype BEFORE padding.
    xp = jnp.pad(x.astype(mxu_dtype), ((0, Bp - B), (0, 0)))

    # VMEM footprint (VMEM tiles pad sublanes to 8 and lanes to 128).
    isz = jnp.dtype(mxu_dtype).itemsize
    out_isz = jnp.dtype(out_dtype).itemsize
    lane = lambda n: _round_up(n, 128)
    sub = lambda n: _round_up(n, 8)
    w_bytes = (sub(F) * lane(H1) + sub(H1) * lane(H2) + sub(H2) * Cp) * isz
    b_bytes = 8 * (lane(H1) + lane(H2) + Cp) * 4
    wbuf = 1 if single_buffer_weights else 2

    # TODO(synk): add an output-feature (N) tiling grid axis (or per-layer kernels) when
    # the resident weights exceed the per-TC VMEM budget; the fused kernel currently
    # requires all three weights to be simultaneously VMEM-resident.
    if wbuf * (w_bytes + b_bytes) > int(0.75 * vmem_cap):
        raise ValueError(
            "MLP weights too large to stay VMEM-resident in the fused Pallas kernel; "
            "reduce hidden size or add N-tiling.")

    est = (2 * bb * lane(F) * isz                       # double-buffered x tiles
           + 2 * bb * Cp * out_isz                      # double-buffered output tiles
           + wbuf * (w_bytes + b_bytes)                 # resident weights + biases
           + 2 * bb * max(lane(H1), lane(H2)) * 4)      # f32 intermediates headroom
    vmem_limit = int(min(vmem_cap, max(32 * _MIB, 2 * est)))

    wmode = {"pipeline_mode": pl.Buffered(1)} if single_buffer_weights else {}
    in_specs = [
        pl.BlockSpec((bb, F), lambda i: (i, 0)),              # x tile (pipelined)
        pl.BlockSpec((F, H1), lambda i: (0, 0), **wmode),     # w1 (resident)
        pl.BlockSpec((1, H1), lambda i: (0, 0), **wmode),     # b1
        pl.BlockSpec((H1, H2), lambda i: (0, 0), **wmode),    # w2
        pl.BlockSpec((1, H2), lambda i: (0, 0), **wmode),     # b2
        pl.BlockSpec((H2, Cp), lambda i: (0, 0), **wmode),    # w3
        pl.BlockSpec((1, Cp), lambda i: (0, 0), **wmode),     # b3
    ]
    out_spec = pl.BlockSpec((bb, Cp), lambda i: (i, 0))

    cost = pl.CostEstimate(
        flops=2 * Bp * (F * H1 + H1 * H2 + H2 * Cp),
        transcendentals=0,
        bytes_accessed=int(Bp * F * isz + w_bytes + b_bytes + Bp * Cp * out_isz),
    )

    out_padded = pl.pallas_call(
        _mlp_kernel,
        out_shape=jax.ShapeDtypeStruct((Bp, Cp), out_dtype),
        grid=(n_steps,),
        in_specs=in_specs,
        out_specs=out_spec,
        compiler_params=pltpu.CompilerParams(
            dimension_semantics=("parallel",),
            vmem_limit_bytes=vmem_limit,
        ),
        cost_estimate=cost,
    )(xp, w1, b1, w2, b2, w3, b3)

    return out_padded[:B, :num_classes]


def mlp_forward_prepared(x, prepared_params, num_classes, *, block_b=None,
                         out_dtype=jnp.float32):
    """Forward with pre-prepared (cast/padded) params — the amortized fast path."""
    w1, b1, w2, b2, w3, b3 = prepared_params
    return _mlp_forward_impl(
        x, w1, b1, w2, b2, w3, b3,
        num_classes=num_classes, block_b=block_b, out_dtype=out_dtype,
        generation=_tpu_generation(),
        single_buffer_weights=_supports_single_buffered_weights())


def mlp_forward(x, w1, b1, w2, b2, w3, b3, *, block_b=None,
                mxu_dtype=jnp.bfloat16, out_dtype=jnp.float32):
    """Pallas MLP forward: x [B, num_fin] -> [B, num_classes] (float32 by default).

    Matches nn.Sequential(Linear, ReLU, Linear, ReLU, Linear) applied to x.to(float32).
    MXU operands are fed in `mxu_dtype` (bf16 default) with f32 accumulation and f32
    bias-add/ReLU.  Prefer prepare_mlp_params() + mlp_forward_prepared() in loops so the
    weight cast/pad is done once.
    """
    params, num_classes = prepare_mlp_params(w1, b1, w2, b2, w3, b3, mxu_dtype=mxu_dtype)
    return mlp_forward_prepared(x, params, num_classes, block_b=block_b,
                                out_dtype=out_dtype)


def init_linear_params(key, fan_in, fan_out):
    """PyTorch-style nn.Linear init: U(-1/sqrt(fan_in), 1/sqrt(fan_in))."""
    kw, kb = jax.random.split(key)
    bound = 1.0 / (fan_in ** 0.5)
    # Stored as [in, out] (transposed vs torch's [out, in]) for row-major matmul.
    w = jax.random.uniform(kw, (fan_in, fan_out), jnp.float32, -bound, bound)
    b = jax.random.uniform(kb, (1, fan_out), jnp.float32, -bound, bound)
    return w, b


def mlp_reference(x, w1, b1, w2, b2, w3, b3):
    x = x.astype(jnp.float32)
    h1 = jnp.maximum(x @ w1 + b1, 0.0)
    h2 = jnp.maximum(h1 @ w2 + b2, 0.0)
    return h2 @ w3 + b3


if __name__ == "__main__":
    # Small shapes consistent with the module: num_fin=32, num_hidden=32, num_classes=16.
    batch, num_fin, num_hidden, num_classes = 8, 32, 32, 16

    key = jax.random.PRNGKey(0)
    kx, k1, k2, k3 = jax.random.split(key, 4)

    x = jax.random.normal(kx, (batch, num_fin), dtype=jnp.float32)
    w1, b1 = init_linear_params(k1, num_fin, num_hidden)
    w2, b2 = init_linear_params(k2, num_hidden, num_hidden)
    w3, b3 = init_linear_params(k3, num_hidden, num_classes)

    ref = mlp_reference(x, w1, b1, w2, b2, w3, b3)

    # Default path: bf16 MXU feed with f32 accumulation (native MXU path on v5e/v6e/v7x),
    # weights prepared once and reused.
    params_bf16, n_cls = prepare_mlp_params(w1, b1, w2, b2, w3, b3)
    out_bf16 = jax.block_until_ready(mlp_forward_prepared(x, params_bf16, n_cls))
    assert out_bf16.shape == (batch, num_classes)
    assert out_bf16.dtype == jnp.float32
    assert jnp.allclose(out_bf16, ref, atol=5e-2, rtol=5e-2), "bf16 Pallas output mismatch"

    # f32 MXU feed: numerically matches the PyTorch module's f32 math.
    out_f32 = jax.block_until_ready(
        mlp_forward(x, w1, b1, w2, b2, w3, b3, mxu_dtype=jnp.float32))
    assert out_f32.shape == (batch, num_classes)
    assert jnp.allclose(out_f32, ref, atol=1e-5, rtol=1e-5), "f32 Pallas output mismatch"

    print("KERNEL_OK")
</pallas_src>

<mosaic_0001>
module attributes {stable_mosaic.version = 11 : i64} {
  func.func @_probe(%arg0: i32, %arg1: memref<8x128xf32, #tpu.memory_space<vmem>>, %arg2: memref<8x128xf32, #tpu.memory_space<vmem>>) attributes {dimension_semantics = [#tpu.dimension_semantics<arbitrary>], iteration_bounds = array<i64: 2>, scalar_prefetch = 0 : i64, scratch_operands = 0 : i64, tpu.core_type = #tpu.core_type<tc>, window_params = [{pipeline_mode = #tpu.pipeline_mode<synchronous>, transform_indices = @transform_0, window_bounds = array<i64: 8, 128>}, {transform_indices = @transform_1, window_bounds = array<i64: 8, 128>}]} {
    %c0 = arith.constant 0 : index
    %c0_0 = arith.constant 0 : index
    %0 = vector.load %arg1[%c0, %c0_0] : memref<8x128xf32, #tpu.memory_space<vmem>>, vector<8x128xf32>
    %cst = arith.constant 1.000000e+00 : f32
    %1 = vector.broadcast %cst : f32 to vector<8x128xf32>
    %2 = arith.addf %0, %1 : vector<8x128xf32>
    %c0_1 = arith.constant 0 : index
    %c0_2 = arith.constant 0 : index
    %3 = vector.load %arg2[%c0_1, %c0_2] : memref<8x128xf32, #tpu.memory_space<vmem>>, vector<8x128xf32>
    tpu.vector_store %arg2[%c0_1, %c0_2], %2 {strides = array<i32>} : memref<8x128xf32, #tpu.memory_space<vmem>>, vector<8x128xf32>,
    return
  }
  func.func @transform_0(%arg0: i32) -> (i32, i32) {
    %c0_i32 = arith.constant 0 : i32
    %c0_i32_0 = arith.constant 0 : i32
    %c0_i32_1 = arith.constant 0 : i32
    return %c0_i32, %c0_i32_0 : i32, i32
  }
  func.func @transform_1(%arg0: i32) -> (i32, i32) {
    %c0_i32 = arith.constant 0 : i32
    %c0_i32_0 = arith.constant 0 : i32
    return %arg0, %c0_i32 : i32, i32
  }
}

module attributes {stable_mosaic.version = 11 : i64} {
  func.func @_mlp_kernel(%arg0: i32, %arg1: memref<8x32xbf16, #tpu.memory_space<vmem>>, %arg2: memref<32x32xbf16, #tpu.memory_space<vmem>>, %arg3: memref<1x32xf32, #tpu.memory_space<vmem>>, %arg4: memref<32x32xbf16, #tpu.memory_space<vmem>>, %arg5: memref<1x32xf32, #tpu.memory_space<vmem>>, %arg6: memref<32x128xbf16, #tpu.memory_space<vmem>>, %arg7: memref<1x128xf32, #tpu.memory_space<vmem>>, %arg8: memref<8x128xf32, #tpu.memory_space<vmem>>) attributes {dimension_semantics = [#tpu.dimension_semantics<parallel>], iteration_bounds = array<i64: 1>, scalar_prefetch = 0 : i64, scratch_operands = 0 : i64, tpu.core_type = #tpu.core_type<tc>, window_params = [{transform_indices = @transform_0, window_bounds = array<i64: 8, 32>}, {pipeline_mode = #tpu.pipeline_mode<synchronous>, transform_indices = @transform_1, window_bounds = array<i64: 32, 32>}, {pipeline_mode = #tpu.pipeline_mode<synchronous>, transform_indices = @transform_2, window_bounds = array<i64: 1, 32>}, {pipeline_mode = #tpu.pipeline_mode<synchronous>, transform_indices = @transform_3, window_bounds = array<i64: 32, 32>}, {pipeline_mode = #tpu.pipeline_mode<synchronous>, transform_indices = @transform_4, window_bounds = array<i64: 1, 32>}, {pipeline_mode = #tpu.pipeline_mode<synchronous>, transform_indices = @transform_5, window_bounds = array<i64: 32, 128>}, {pipeline_mode = #tpu.pipeline_mode<synchronous>, transform_indices = @transform_6, window_bounds = array<i64: 1, 128>}, {transform_indices = @transform_7, window_bounds = array<i64: 8, 128>}]} {
    %c0 = arith.constant 0 : index
    %c0_0 = arith.constant 0 : index
    %0 = vector.load %arg1[%c0, %c0_0] : memref<8x32xbf16, #tpu.memory_space<vmem>>, vector<8x32xbf16>
    %c0_1 = arith.constant 0 : index
    %c0_2 = arith.constant 0 : index
    %1 = vector.load %arg2[%c0_1, %c0_2] : memref<32x32xbf16, #tpu.memory_space<vmem>>, vector<32x32xbf16>
    %cst = arith.constant dense<0.000000e+00> : vector<8x32xf32>
    %2 = tpu.matmul %0, %1, %cst {dimension_numbers = #tpu.dot_dimension_numbers<[1], [0], [0], [1], [0, 0, 1, 1], [], []>} : vector<8x32xbf16>, vector<32x32xbf16>, vector<8x32xf32> -> vector<8x32xf32>
    %c0_3 = arith.constant 0 : index
    %c0_4 = arith.constant 0 : index
    %3 = vector.load %arg3[%c0_3, %c0_4] : memref<1x32xf32, #tpu.memory_space<vmem>>, vector<1x32xf32>
    %4 = vector.broadcast %3 : vector<1x32xf32> to vector<8x32xf32>
    %5 = arith.addf %2, %4 : vector<8x32xf32>
    %cst_5 = arith.constant 0.000000e+00 : f32
    %6 = vector.broadcast %cst_5 : f32 to vector<8x32xf32>
    %7 = arith.maximumf %5, %6 : vector<8x32xf32>
    %8 = arith.truncf %7 : vector<8x32xf32> to vector<8x32xbf16>
    %c0_6 = arith.constant 0 : index
    %c0_7 = arith.constant 0 : index
    %9 = vector.load %arg4[%c0_6, %c0_7] : memref<32x32xbf16, #tpu.memory_space<vmem>>, vector<32x32xbf16>
    %cst_8 = arith.constant dense<0.000000e+00> : vector<8x32xf32>
    %10 = tpu.matmul %8, %9, %cst_8 {dimension_numbers = #tpu.dot_dimension_numbers<[1], [0], [0], [1], [0, 0, 1, 1], [], []>} : vector<8x32xbf16>, vector<32x32xbf16>, vector<8x32xf32> -> vector<8x32xf32>
    %c0_9 = arith.constant 0 : index
    %c0_10 = arith.constant 0 : index
    %11 = vector.load %arg5[%c0_9, %c0_10] : memref<1x32xf32, #tpu.memory_space<vmem>>, vector<1x32xf32>
    %12 = vector.broadcast %11 : vector<1x32xf32> to vector<8x32xf32>
    %13 = arith.addf %10, %12 : vector<8x32xf32>
    %cst_11 = arith.constant 0.000000e+00 : f32
    %14 = vector.broadcast %cst_11 : f32 to vector<8x32xf32>
    %15 = arith.maximumf %13, %14 : vector<8x32xf32>
    %16 = arith.truncf %15 : vector<8x32xf32> to vector<8x32xbf16>
    %c0_12 = arith.constant 0 : index
    %c0_13 = arith.constant 0 : index
    %17 = vector.load %arg6[%c0_12, %c0_13] : memref<32x128xbf16, #tpu.memory_space<vmem>>, vector<32x128xbf16>
    %cst_14 = arith.constant dense<0.000000e+00> : vector<8x128xf32>
    %18 = tpu.matmul %16, %17, %cst_14 {dimension_numbers = #tpu.dot_dimension_numbers<[1], [0], [0], [1], [0, 0, 1, 1], [], []>} : vector<8x32xbf16>, vector<32x128xbf16>, vector<8x128xf32> -> vector<8x128xf32>
    %c0_15 = arith.constant 0 : index
    %c0_16 = arith.constant 0 : index
    %19 = vector.load %arg7[%c0_15, %c0_16] : memref<1x128xf32, #tpu.memory_space<vmem>>, vector<1x128xf32>
    %20 = vector.broadcast %19 : vector<1x128xf32> to vector<8x128xf32>
    %21 = arith.addf %18, %20 : vector<8x128xf32>
    %c0_17 = arith.constant 0 : index
    %c0_18 = arith.constant 0 : index
    %22 = vector.load %arg8[%c0_17, %c0_18] : memref<8x128xf32, #tpu.memory_space<vmem>>, vector<8x128xf32>
    tpu.vector_store %arg8[%c0_17, %c0_18], %21 {strides = array<i32>} : memref<8x128xf32, #tpu.memory_space<vmem>>, vector<8x128xf32>,
    return
  }
  func.func @transform_0(%arg0: i32) -> (i32, i32) {
    %c0_i32 = arith.constant 0 : i32
    %c0_i32_0 = arith.constant 0 : i32
    return %arg0, %c0_i32 : i32, i32
  }
  func.func @transform_1(%arg0: i32) -> (i32, i32) {
    %c0_i32 = arith.constant 0 : i32
    %c0_i32_0 = arith.constant 0 : i32
    %c0_i32_1 = arith.constant 0 : i32
    return %c0_i32, %c0_i32_0 : i32, i32
  }
  func.func @transform_2(%arg0: i32) -> (i32, i32) {
    %c0_i32 = arith.constant 0 : i32
    %c0_i32_0 = arith.constant 0 : i32
    %c0_i32_1 = arith.constant 0 : i32
    return %c0_i32, %c0_i32_0 : i32, i32
  }
  func.func @transform_3(%arg0: i32) -> (i32, i32) {
    %c0_i32 = arith.constant 0 : i32
    %c0_i32_0 = arith.constant 0 : i32
    %c0_i32_1 = arith.constant 0 : i32
    return %c0_i32, %c0_i32_0 : i32, i32
  }
  func.func @transform_4(%arg0: i32) -> (i32, i32) {
    %c0_i32 = arith.constant 0 : i32
    %c0_i32_0 = arith.constant 0 : i32
    %c0_i32_1 = arith.constant 0 : i32
    return %c0_i32, %c0_i32_0 : i32, i32
  }
  func.func @transform_5(%arg0: i32) -> (i32, i32) {
    %c0_i32 = arith.constant 0 : i32
    %c0_i32_0 = arith.constant 0 : i32
    %c0_i32_1 = arith.constant 0 : i32
    return %c0_i32, %c0_i32_0 : i32, i32
  }
  func.func @transform_6(%arg0: i32) -> (i32, i32) {
    %c0_i32 = arith.constant 0 : i32
    %c0_i32_0 = arith.constant 0 : i32
    %c0_i32_1 = arith.constant 0 : i32
    return %c0_i32, %c0_i32_0 : i32, i32
  }
  func.func @transform_7(%arg0: i32) -> (i32, i32) {
    %c0_i32 = arith.constant 0 : i32
    %c0_i32_0 = arith.constant 0 : i32
    return %arg0, %c0_i32 : i32, i32
  }
}

</mosaic_0001>

<llo_original>
// kernel: tpu_custom_call.1
$region0: #{tpu_custom_call.1}
  #allocation0 [shape = 'u32[]', space=smem, size = 0x4, offset = 0x4, fixed_abs, tag = 'smem constant byte address 0x4 - core index']
  #allocation1 [shape = 'u32[72,128]{1,0:T(1,128)}', space=vmem, size = 0x9000, scoped, tag = 'internal scratch']
  %s0 = inlined_call_operand.hbm [shape: f32[8,128], index: 0, kind: input, shape index: {}]
  %s1 = inlined_call_operand.hbm [shape: f32[16,128], index: 1, kind: output, shape index: {}]
  %s2 = sld [smem:[#allocation0]]
  $region41: #{tpu_custom_call.1} parent=0
    _
  %s4 = ssub.s32 1, %s2
  %s5 = scalar_select 0, %s4, %s2
  $region1: #{tpu_custom_call.1} parent=0
    #allocation2 [shape = 'u8[4096]{0}', space=vmem, size = 0x1000, scoped, tag = 'input window, operand 0, single buffered']
    #allocation3 [shape = 's32[2]{0}', space=sflag, size = 0x8, scoped, tag = 'scoped memory for tpu_custom_call.1']
    #allocation4 [shape = 's32[2]{0}', space=sflag, size = 0x8, scoped, tag = 'scoped memory for tpu_custom_call.1']
    #allocation5 [shape = 'u8[8192]{0}', space=vmem, size = 0x2000, scoped, tag = 'output window, operand 0']
    %6 = vsyncpa [#allocation3], 0
    %7 = vsyncpa [#allocation4], 0
    %s8 = scalar_lea.sflag [#allocation4], 1
    %9 = vsyncpa %s8, 0
    loop: start=0, step=1, limit=4
    $region2: #{tpu_custom_call.1} parent=1 // loop_pre_header
      _
    $region3: #{tpu_custom_call.1} parent=1 // loop_header
      %s11 = sphi 0, %s15
      %p12 = scmp.ge.s32.totalorder %s11, 4
      %s19 = sphi 0, %s19
      %s21 = sphi 0, %s19
      %s22 = sphi 0, %s21
      %s36 = sphi 0, %s22
      %s42 = sphi 0, %s44
      %s45 = sphi 0, %s42
      %s46 = sphi 0, %s45
      %s62 = sphi 0, %s46
    $region4: #{tpu_custom_call.1} parent=1 // loop_header_branch
      %14 = sbr.rel (%p12) target = $region8
    $region5: #{tpu_custom_call.1} parent=1 // loop_body
      %s16 = ssub.s32 %s11, 1
      %s17 = ssub.s32 %s11, 2
      %s18 = sadd.s32 %s11, 1
      %s20 = sadd.s32 %s19, 1
      %p23 = scmp.eq.s32.totalorder %s11, 1
      %p24 = scmp.ne.s32.totalorder %s19, %s21
      %p25 = scmp.eq.s32.totalorder %s11, 0
      %p26 = por %p24, %p25
      %p27 = scmp.ne.s32.totalorder %s19, %s21
      %p28 = scmp.eq.s32.totalorder %s16, 1
      %p29 = por %p27, %p28
      %p30 = scmp.ne.s32.totalorder %s21, %s22
      %p31 = scmp.eq.s32.totalorder %s16, 0
      %p32 = por %p30, %p31
      %p33 = scmp.ne.s32.totalorder %s21, %s22
      %p34 = scmp.eq.s32.totalorder %s17, 1
      %p35 = por %p33, %p34
      %p37 = scmp.ne.s32.totalorder %s22, %s36
      %p38 = scmp.eq.s32.totalorder %s17, 0
      %p39 = por %p37, %p38
      %s40 = ssub.s32 %s11, %s18
      %p41 = scmp.eq.s32.totalorder %s40, 0
      %s43 = sadd.s32 %s42, 1
      %s44 = scalar_select %p41, %s42, %s43
      %p47 = pneg %p41
      %p48 = scmp.eq.s32.totalorder %s11, 1
      %p49 = por %p47, %p48
      %p50 = scmp.ne.s32.totalorder %s42, %s45
      %p51 = scmp.eq.s32.totalorder %s11, 0
      %p52 = por %p50, %p51
      %p53 = scmp.ne.s32.totalorder %s42, %s45
      %p54 = scmp.eq.s32.totalorder %s16, 1
      %p55 = por %p53, %p54
      %p56 = scmp.ne.s32.totalorder %s45, %s46
      %p57 = scmp.eq.s32.totalorder %s16, 0
      %p58 = por %p56, %p57
      %p59 = scmp.ne.s32.totalorder %s45, %s46
      %p60 = scmp.eq.s32.totalorder %s17, 1
      %p61 = por %p59, %p60
      %p63 = scmp.ne.s32.totalorder %s46, %s62
      %p64 = scmp.eq.s32.totalorder %s17, 0
      %p65 = por %p63, %p64
      %p66 = scmp.le.s32.totalorder 1, %s11
      %p67 = scmp.lt.s32.totalorder %s11, 3
      %p68 = pnand %p66, %p67
      %p69 = pneg %p68
      // Predicated region
      $region9: #{tpu_custom_call.1} parent=5 // pred_check
        _
      $region10: #{tpu_custom_call.1} parent=5 // pred_check_branch
        %71 = sbr.rel (%p68) target = $region12
      $region11: #{tpu_custom_call.1} parent=5 // pred_region
        %s72 = ssub.s32 %s11, 1
        // Predicated region
        $region13: #{tpu_custom_call.1} parent=11 // pred_check
          %p73 = pneg %p32
        $region14: #{tpu_custom_call.1} parent=11 // pred_check_branch
          %75 = sbr.rel (%p73) target = $region16
        $region15: #{tpu_custom_call.1} parent=11 // pred_region
          %77 = vsyncadd [#allocation3], 0
          %s79 = sshll.u32 %s0, 4
          %s80 = int_to_ptr.hbm [resolvable:$true] %s79
          %s81 = sshll.u32 [#allocation2], 4
          %s82 = int_to_ptr.vmem [resolvable:$true] %s81
          %84 = dma.hbm_to_vmem [thread:$0]  %s80, 128, %s82, [#allocation3]
        $region16: #{tpu_custom_call.1} parent=11 // pred_fallthru
          _
      $region12: #{tpu_custom_call.1} parent=5 // pred_fallthru
        _
      %p85 = scmp.lt.s32.totalorder %s11, 2
      // Predicated region
      $region17: #{tpu_custom_call.1} parent=5 // pred_check
        %p86 = pneg %p85
      $region18: #{tpu_custom_call.1} parent=5 // pred_check_branch
        %88 = sbr.rel (%p86) target = $region20
      $region19: #{tpu_custom_call.1} parent=5 // pred_region
        _
      $region20: #{tpu_custom_call.1} parent=5 // pred_fallthru
        _
      %p89 = scmp.le.s32.totalorder 1, %s11
      %p90 = scmp.lt.s32.totalorder %s11, 3
      %p91 = pnand %p89, %p90
      %p92 = pneg %p91
      // Predicated region
      $region21: #{tpu_custom_call.1} parent=5 // pred_check
        _
      $region22: #{tpu_custom_call.1} parent=5 // pred_check_branch
        %94 = sbr.rel (%p91) target = $region24
      $region23: #{tpu_custom_call.1} parent=5 // pred_region
        %s95 = ssub.s32 %s11, 1
        // Predicated region
        $region25: #{tpu_custom_call.1} parent=23 // pred_check
          %p96 = pneg %p32
        $region26: #{tpu_custom_call.1} parent=23 // pred_check_branch
          %98 = sbr.rel (%p96) target = $region28
        $region27: #{tpu_custom_call.1} parent=23 // pred_region
          %100 = dma.done [#allocation3], 128
        $region28: #{tpu_custom_call.1} parent=23 // pred_fallthru
          _
        %p101 = pneg %p32
        %p102 = pneg %p29
        %p103 = pneg %p58
        %p104 = pneg %p55
        %s105 = sand.u32 %s45, 1
        %s106 = scalar_lea.sflag [#allocation4], %s105
        %s107 = sand.u32 %s45, 1
        %s108 = smul.addr %s107, 8
        %s109 = scalar_lea.vmem [#allocation5], %s108
        %v110 = vld [vmem:[#allocation2] sm:$0xff]
        %v111 = vadd.f32 %v110, 1.0
        %112 = vst [vmem:[%s109] sm:$0xff] %v111
        %s113 = sand.u32 %s45, 1
        %s114 = scalar_lea.sflag [#allocation4], %s113
        %s115 = sand.u32 %s45, 1
        %s116 = smul.addr %s115, 8
        %s117 = scalar_lea.vmem [#allocation5], %s116
        // Predicated region
        $region29: #{tpu_custom_call.1} parent=23 // pred_check
          %p118 = pneg %p55
        $region30: #{tpu_custom_call.1} parent=23 // pred_check_branch
          %120 = sbr.rel (%p118) target = $region32
        $region31: #{tpu_custom_call.1} parent=23 // pred_region
          %122 = vsyncadd %s114, 0
          %s123 = smul.addr %s16, 8
          %s124 = scalar_lea.hbm %s1, %s123
          %s126 = sshll.u32 %s117, 4
          %s127 = int_to_ptr.vmem [resolvable:$true] %s126
          %s128 = sshll.u32 %s124, 4
          %s129 = int_to_ptr.hbm [resolvable:$true] %s128
          %131 = dma.vmem_to_hbm [thread:$0]  %s127, 128, %s129, %s114
        $region32: #{tpu_custom_call.1} parent=23 // pred_fallthru
          _
      $region24: #{tpu_custom_call.1} parent=5 // pred_fallthru
        _
      %p132 = scmp.le.s32.totalorder 2, %s11
      // Predicated region
      $region33: #{tpu_custom_call.1} parent=5 // pred_check
        %p133 = pneg %p132
      $region34: #{tpu_custom_call.1} parent=5 // pred_check_branch
        %135 = sbr.rel (%p133) target = $region36
      $region35: #{tpu_custom_call.1} parent=5 // pred_region
        %s136 = ssub.s32 %s11, 2
        // Predicated region
        $region37: #{tpu_custom_call.1} parent=35 // pred_check
          %p137 = pneg %p61
        $region38: #{tpu_custom_call.1} parent=35 // pred_check_branch
          %139 = sbr.rel (%p137) target = $region40
        $region39: #{tpu_custom_call.1} parent=35 // pred_region
          %s140 = sand.u32 %s46, 1
          %s141 = scalar_lea.sflag [#allocation4], %s140
          %s142 = sand.u32 %s46, 1
          %s143 = smul.addr %s142, 8
          %s144 = scalar_lea.vmem [#allocation5], %s143
          %146 = dma.done %s141, 128
        $region40: #{tpu_custom_call.1} parent=35 // pred_fallthru
          _
      $region36: #{tpu_custom_call.1} parent=5 // pred_fallthru
        _
    $region6: #{tpu_custom_call.1} parent=1 // loop_footer
      %s15 = sadd.s32 1, %s11
    $region7: #{tpu_custom_call.1} parent=1 // loop_footer_branch
      %10 = sbr.rel target = $region3
    $region8: #{tpu_custom_call.1} parent=1 // loop_exit
      _
    %147 = vsyncpa [#allocation3], 1
    %s148 = scalar_lea.sflag [#allocation3], 1
    %149 = vsyncpa %s148, 1
    %150 = vsyncpa [#allocation4], 1
    %s151 = scalar_lea.sflag [#allocation4], 1
    %152 = vsyncpa %s151, 1

// kernel: _mlp_forward_impl.1
$region0: #{_mlp_forward_impl.1}
  #allocation0 [shape = 'u32[]', space=smem, size = 0x4, offset = 0x4, fixed_abs, tag = 'smem constant byte address 0x4 - core index']
  #allocation1 [shape = 'u32[72,128]{1,0:T(1,128)}', space=vmem, size = 0x9000, scoped, tag = 'internal scratch']
  %s0 = inlined_call_operand.vmem [shape: bf16[8,32], index: 0, kind: input, shape index: {}]
  %s1 = inlined_call_operand.hbm [shape: bf16[32,32], index: 1, kind: input, shape index: {}]
  %s2 = inlined_call_operand.hbm [shape: f32[1,32], index: 2, kind: input, shape index: {}]
  %s3 = inlined_call_operand.hbm [shape: bf16[32,32], index: 3, kind: input, shape index: {}]
  %s4 = inlined_call_operand.hbm [shape: f32[1,32], index: 4, kind: input, shape index: {}]
  %s5 = inlined_call_operand.vmem [shape: bf16[32,128], index: 5, kind: input, shape index: {}]
  %s6 = inlined_call_operand.vmem [shape: f32[1,128], index: 6, kind: input, shape index: {}]
  %s7 = inlined_call_operand.hbm [shape: f32[8,128], index: 7, kind: output, shape index: {}]
  %s8 = sld [smem:[#allocation0]]
  $region54: #{_mlp_forward_impl.1} parent=0
    _
  %s10 = ssub.s32 1, %s8
  %s11 = scalar_select 0, %s10, %s8
  $region1: #{_mlp_forward_impl.1} parent=0
    #allocation2 [shape = 'u8[8192]{0}', space=vmem, size = 0x2000, scoped, tag = 'input window, operand 1, single buffered']
    #allocation3 [shape = 's32[1]{0}', space=sflag, size = 0x4, scoped, tag = 'scoped memory for _mlp_forward_impl.1']
    #allocation4 [shape = 's32[1]{0}', space=sflag, size = 0x4, scoped, tag = 'scoped memory for _mlp_forward_impl.1']
    #allocation5 [shape = 'u8[512]{0}', space=vmem, size = 0x400, scoped, tag = 'input window, operand 2, single buffered']
    #allocation6 [shape = 's32[1]{0}', space=sflag, size = 0x4, scoped, tag = 'scoped memory for _mlp_forward_impl.1']
    #allocation7 [shape = 'u8[8192]{0}', space=vmem, size = 0x2000, scoped, tag = 'input window, operand 3, single buffered']
    #allocation8 [shape = 'u8[512]{0}', space=vmem, size = 0x400, scoped, tag = 'input window, operand 4, single buffered']
    #allocation9 [shape = 's32[1]{0}', space=sflag, size = 0x4, scoped, tag = 'scoped memory for _mlp_forward_impl.1']
    #allocation10 [shape = 'u8[4096]{0}', space=vmem, size = 0x1000, scoped, tag = 'output window, operand 0, single buffered']
    %12 = vsyncpa [#allocation3], 0
    %13 = vsyncpa [#allocation6], 0
    %14 = vsyncpa [#allocation9], 0
    %15 = vsyncpa [#allocation4], 0
    // Predicated region
    $region2: #{_mlp_forward_impl.1} parent=1 // pred_check
      _
    $region3: #{_mlp_forward_impl.1} parent=1 // pred_check_branch
      %17 = sbr.rel (0) target = $region5
    $region4: #{_mlp_forward_impl.1} parent=1 // pred_region
      _
    $region5: #{_mlp_forward_impl.1} parent=1 // pred_fallthru
      _
    // Predicated region
    $region6: #{_mlp_forward_impl.1} parent=1 // pred_check
      _
    $region7: #{_mlp_forward_impl.1} parent=1 // pred_check_branch
      %19 = sbr.rel (0) target = $region9
    $region8: #{_mlp_forward_impl.1} parent=1 // pred_region
      %21 = vsyncadd [#allocation3], 0
      %s22 = sshll.u32 %s1, 4
      %s23 = int_to_ptr.hbm [resolvable:$true] %s22
      %s24 = sshll.u32 [#allocation2], 4
      %s25 = int_to_ptr.vmem [resolvable:$true] %s24
      %30 = dma.hbm_to_vmem [thread:$0]  %s23, 256, %s25, [#allocation3], 64, 64, 4
    $region9: #{_mlp_forward_impl.1} parent=1 // pred_fallthru
      _
    // Predicated region
    $region10: #{_mlp_forward_impl.1} parent=1 // pred_check
      _
    $region11: #{_mlp_forward_impl.1} parent=1 // pred_check_branch
      %32 = sbr.rel (0) target = $region13
    $region12: #{_mlp_forward_impl.1} parent=1 // pred_region
      %34 = vsyncadd [#allocation6], 0
      %s36 = sshll.u32 %s2, 4
      %s37 = int_to_ptr.hbm [resolvable:$true] %s36
      %s38 = sshll.u32 [#allocation5], 4
      %s39 = int_to_ptr.vmem [resolvable:$true] %s38
      %41 = dma.hbm_to_vmem [thread:$0]  %s37, 16, %s39, [#allocation6]
    $region13: #{_mlp_forward_impl.1} parent=1 // pred_fallthru
      _
    // Predicated region
    $region14: #{_mlp_forward_impl.1} parent=1 // pred_check
      _
    $region15: #{_mlp_forward_impl.1} parent=1 // pred_check_branch
      %43 = sbr.rel (0) target = $region17
    $region16: #{_mlp_forward_impl.1} parent=1 // pred_region
      %45 = vsyncadd [#allocation6], 0
      %s46 = sshll.u32 %s3, 4
      %s47 = int_to_ptr.hbm [resolvable:$true] %s46
      %s48 = sshll.u32 [#allocation7], 4
      %s49 = int_to_ptr.vmem [resolvable:$true] %s48
      %54 = dma.hbm_to_vmem [thread:$0]  %s47, 256, %s49, [#allocation6], 64, 64, 4
    $region17: #{_mlp_forward_impl.1} parent=1 // pred_fallthru
      _
    // Predicated region
    $region18: #{_mlp_forward_impl.1} parent=1 // pred_check
      _
    $region19: #{_mlp_forward_impl.1} parent=1 // pred_check_branch
      %56 = sbr.rel (0) target = $region21
    $region20: #{_mlp_forward_impl.1} parent=1 // pred_region
      %58 = vsyncadd [#allocation9], 0
      %s60 = sshll.u32 %s4, 4
      %s61 = int_to_ptr.hbm [resolvable:$true] %s60
      %s62 = sshll.u32 [#allocation8], 4
      %s63 = int_to_ptr.vmem [resolvable:$true] %s62
      %65 = dma.hbm_to_vmem [thread:$0]  %s61, 16, %s63, [#allocation9]
    $region21: #{_mlp_forward_impl.1} parent=1 // pred_fallthru
      _
    // Predicated region
    $region22: #{_mlp_forward_impl.1} parent=1 // pred_check
      _
    $region23: #{_mlp_forward_impl.1} parent=1 // pred_check_branch
      %67 = sbr.rel (0) target = $region25
    $region24: #{_mlp_forward_impl.1} parent=1 // pred_region
      _
    $region25: #{_mlp_forward_impl.1} parent=1 // pred_fallthru
      _
    // Predicated region
    $region26: #{_mlp_forward_impl.1} parent=1 // pred_check
      _
    $region27: #{_mlp_forward_impl.1} parent=1 // pred_check_branch
      %69 = sbr.rel (0) target = $region29
    $region28: #{_mlp_forward_impl.1} parent=1 // pred_region
      _
    $region29: #{_mlp_forward_impl.1} parent=1 // pred_fallthru
      _
    // Predicated region
    $region30: #{_mlp_forward_impl.1} parent=1 // pred_check
      _
    $region31: #{_mlp_forward_impl.1} parent=1 // pred_check_branch
      %71 = sbr.rel (0) target = $region33
    $region32: #{_mlp_forward_impl.1} parent=1 // pred_region
      %73 = dma.done [#allocation3], 256
    $region33: #{_mlp_forward_impl.1} parent=1 // pred_fallthru
      _
    // Predicated region
    $region34: #{_mlp_forward_impl.1} parent=1 // pred_check
      _
    $region35: #{_mlp_forward_impl.1} parent=1 // pred_check_branch
      %75 = sbr.rel (0) target = $region37
    $region36: #{_mlp_forward_impl.1} parent=1 // pred_region
      %77 = dma.done [#allocation6], 16
    $region37: #{_mlp_forward_impl.1} parent=1 // pred_fallthru
      _
    // Predicated region
    $region38: #{_mlp_forward_impl.1} parent=1 // pred_check
      _
    $region39: #{_mlp_forward_impl.1} parent=1 // pred_check_branch
      %79 = sbr.rel (0) target = $region41
    $region40: #{_mlp_forward_impl.1} parent=1 // pred_region
      %81 = dma.done [#allocation6], 256
    $region41: #{_mlp_forward_impl.1} parent=1 // pred_fallthru
      _
    // Predicated region
    $region42: #{_mlp_forward_impl.1} parent=1 // pred_check
      _
    $region43: #{_mlp_forward_impl.1} parent=1 // pred_check_branch
      %83 = sbr.rel (0) target = $region45
    $region44: #{_mlp_forward_impl.1} parent=1 // pred_region
      %85 = dma.done [#allocation9], 16
    $region45: #{_mlp_forward_impl.1} parent=1 // pred_fallthru
      _
    %v87 = vld [vmem:[%s0] sm:$0xf]
    %v88 = vld [vmem:[#allocation2] sm:$0xf]
    %v89 = vld [vmem:[#allocation2 + $0x4] sm:$0xf]
    %v90 = vld [vmem:[#allocation2 + $0x8] sm:$0xf]
    %v91 = vld [vmem:[#allocation2 + $0xc] sm:$0xf]
    %v92 = vld [vmem:[#allocation5] sm:$0x1]
    %v94 = vperm.slane %v92, 0
    %v100 = vunpack.c.l.b16 %v88
    %v101 = vunpack.c.l.b16 %v89
    %v102 = vunpack.c.l.b16 %v90
    %v103 = vunpack.c.l.b16 %v91
    %v104 = vpack.c.b16 %v101, %v100
    %v105 = vpack.c.b16 %v103, %v102
    %vm108 = vcmask 261120
    %v110 = vsel %vm108, %v87, 0
    %112 = vmatpush.bf16.msra.mxu0 0
    %113 = vmatpush.bf16.msra.mxu0 0
    %114 = vmatpush.bf16.msra.mxu0 0
    %115 = vmatpush.bf16.msra.mxu0 0
    %116 = vmatpush.bf16.msra.mxu0 0
    %117 = vmatpush.bf16.msra.mxu0 0
    %118 = vmatpush.bf16.msra.mxu0 %v105
    %119 = vmatpush.bf16.msra.mxu0 %v104
    %120 = vmatmul.bf16.gmra.mxu0 %v110
    %v121 = vpop.f32.mrf.mxu0
    %v122 = vadd.f32 %v94, %v121
    %v123 = vpop.f32.mrf.mxu0
    %124 = vdwg.mxu0
    %v125 = vmax.f32 %v122, 0.0
    %v126 = vpack.c.bf16 %v125, %v125
    %v127 = vld [vmem:[#allocation7] sm:$0xf]
    %v128 = vld [vmem:[#allocation7 + $0x4] sm:$0xf]
    %v129 = vld [vmem:[#allocation7 + $0x8] sm:$0xf]
    %v130 = vld [vmem:[#allocation7 + $0xc] sm:$0xf]
    %v131 = vld [vmem:[#allocation8] sm:$0x1]
    %v133 = vperm.slane %v131, 0
    %v139 = vunpack.c.l.b16 %v127
    %v140 = vunpack.c.l.b16 %v128
    %v141 = vunpack.c.l.b16 %v129
    %v142 = vunpack.c.l.b16 %v130
    %v143 = vpack.c.b16 %v140, %v139
    %v144 = vpack.c.b16 %v142, %v141
    %v148 = vsel %vm108, %v126, 0
    %150 = vmatpush.bf16.msra.mxu0 0
    %151 = vmatpush.bf16.msra.mxu0 0
    %152 = vmatpush.bf16.msra.mxu0 0
    %153 = vmatpush.bf16.msra.mxu0 0
    %154 = vmatpush.bf16.msra.mxu0 0
    %155 = vmatpush.bf16.msra.mxu0 0
    %156 = vmatpush.bf16.msra.mxu0 %v144
    %157 = vmatpush.bf16.msra.mxu0 %v143
    %158 = vmatmul.bf16.gmra.mxu0 %v148
    %v159 = vpop.f32.mrf.mxu0
    %v160 = vadd.f32 %v133, %v159
    %v161 = vpop.f32.mrf.mxu0
    %162 = vdwg.mxu0
    %v163 = vmax.f32 %v160, 0.0
    %v164 = vpack.c.bf16 %v163, %v163
    %v165 = vld [vmem:[%s5] sm:$0xf]
    %v166 = vld [vmem:[%s5 + $0x4] sm:$0xf]
    %v167 = vld [vmem:[%s5 + $0x8] sm:$0xf]
    %v168 = vld [vmem:[%s5 + $0xc] sm:$0xf]
    %v169 = vld [vmem:[%s6] sm:$0x1]
    %v171 = vperm.slane %v169, 0
    %v177 = vunpack.c.l.b16 %v165
    %v178 = vunpack.c.l.b16 %v166
    %v179 = vunpack.c.l.b16 %v167
    %v180 = vunpack.c.l.b16 %v168
    %v181 = vpack.c.b16 %v178, %v177
    %v182 = vpack.c.b16 %v180, %v179
    %v186 = vsel %vm108, %v164, 0
    %188 = vmatpush.bf16.msra.mxu0 0
    %189 = vmatpush.bf16.msra.mxu0 0
    %190 = vmatpush.bf16.msra.mxu0 0
    %191 = vmatpush.bf16.msra.mxu0 0
    %192 = vmatpush.bf16.msra.mxu0 0
    %193 = vmatpush.bf16.msra.mxu0 0
    %194 = vmatpush.bf16.msra.mxu0 %v182
    %195 = vmatpush.bf16.msra.mxu0 %v181
    %196 = vmatmul.bf16.gmra.mxu0 %v186
    %v197 = vpop.f32.mrf.mxu0
    %v198 = vadd.f32 %v171, %v197
    %v199 = vpop.f32.mrf.mxu0
    %200 = vdwg.mxu0
    %201 = vst [vmem:[#allocation10] sm:$0xff] %v198
    // Predicated region
    $region46: #{_mlp_forward_impl.1} parent=1 // pred_check
      _
    $region47: #{_mlp_forward_impl.1} parent=1 // pred_check_branch
      %203 = sbr.rel (0) target = $region49
    $region48: #{_mlp_forward_impl.1} parent=1 // pred_region
      %205 = vsyncadd [#allocation4], 0
      %s207 = sshll.u32 [#allocation10], 4
      %s208 = int_to_ptr.vmem [resolvable:$true] %s207
      %s209 = sshll.u32 %s7, 4
      %s210 = int_to_ptr.hbm [resolvable:$true] %s209
      %212 = dma.vmem_to_hbm [thread:$0]  %s208, 128, %s210, [#allocation4]
    $region49: #{_mlp_forward_impl.1} parent=1 // pred_fallthru
      _
    // Predicated region
    $region50: #{_mlp_forward_impl.1} parent=1 // pred_check
      _
    $region51: #{_mlp_forward_impl.1} parent=1 // pred_check_branch
      %214 = sbr.rel (0) target = $region53
    $region52: #{_mlp_forward_impl.1} parent=1 // pred_region
      %216 = dma.done [#allocation4], 128
    $region53: #{_mlp_forward_impl.1} parent=1 // pred_fallthru
      _
    %217 = vsyncpa [#allocation3], 1
    %218 = vsyncpa [#allocation6], 1
    %219 = vsyncpa [#allocation9], 1
    %220 = vsyncpa [#allocation4], 1

</llo_original>
